<compile_context>
chip_gen: v7x
topology: tpu7x:2x2x1
jax: 0.10.0
libtpu: 0.0.40
codegen_flags: <defaults>
</compile_context>

<pallas_src>
import functools

import jax
import jax.numpy as jnp
from jax import lax
from jax.experimental import pallas as pl
from jax.experimental.pallas import tpu as pltpu


def _attention_pooling_kernel(*refs, apply_output_proj, score_chunk):
    """One batch tile per grid step.

    refs (apply_output_proj=True):
      x_ref    (S, TB, Din)   mask_ref (S, TB, 1) int32
      wq_w     (Din, Dh)      wq_b (1, Dh) f32
      v_w      (1, Dh) f32    v_b  (1, 1)  f32  [SMEM]
      o_w      (Din, Dh)      o_b  (1, Dh) f32
      out_ref  (TB, Dh) f32
      scratch: s_ref (S, TB, 1) f32, m_ref (TB, 1) f32, l_ref (TB, 1) f32,
               acc_ref (TB, Din) f32
    Without the output projection, o_w/o_b are absent and out_ref is (TB, Din).
    """
    if apply_output_proj:
        (x_ref, mask_ref, wq_w_ref, wq_b_ref, v_w_ref, v_b_ref,
         o_w_ref, o_b_ref, out_ref, s_ref, m_ref, l_ref, acc_ref) = refs
    else:
        (x_ref, mask_ref, wq_w_ref, wq_b_ref, v_w_ref, v_b_ref,
         out_ref, s_ref, m_ref, l_ref, acc_ref) = refs

    S, TB, Din = x_ref.shape
    sc = score_chunk                      # sequence positions per fused chunk
    n_chunks = S // sc
    unroll = n_chunks <= 4

    # Weights/biases: loaded exactly once per grid step (hoisted out of loops).
    wq_w = wq_w_ref[...]                  # (Din, Dh) compute dtype (f32/bf16)
    wq_b = wq_b_ref[...]                  # (1, Dh)  f32
    v_w = v_w_ref[...]                    # (1, Dh)  f32
    v_b = v_b_ref[0, 0]                   # f32 scalar from SMEM
    neg_inf = jnp.float32(-jnp.inf)

    m_ref[...] = jnp.full_like(m_ref, -jnp.inf)
    l_ref[...] = jnp.zeros_like(l_ref)
    acc_ref[...] = jnp.zeros_like(acc_ref)

    # ---- pass 1: fused Wq matmul + tanh + v-reduction + mask + running max --
    # The (sc*TB, Dh) hidden chunk is consumed immediately; the full (S,TB,Dh)
    # intermediate never exists.
    def score_step(c, carry):
        r0 = pl.multiple_of(c * sc, sc)
        xc = x_ref[pl.ds(r0, sc), :, :].reshape(sc * TB, Din)
        h = jnp.tanh(
            jnp.dot(xc, wq_w, preferred_element_type=jnp.float32) + wq_b)
        st = jnp.sum(h * v_w, axis=-1, keepdims=True) + v_b      # (sc*TB, 1)
        st = st.reshape(sc, TB, 1)
        st = jnp.where(mask_ref[pl.ds(r0, sc), :, :] == 0, neg_inf, st)
        s_ref[pl.ds(r0, sc), :, :] = st
        # running max over the sequence axis (elementwise over the sc slabs;
        # sc is a Python int so this is a static, cheap unrolled chain).
        m_c = st[0]
        for u in range(1, sc):
            m_c = jnp.maximum(m_c, st[u])
        m_ref[...] = jnp.maximum(m_ref[...], m_c)
        return carry

    lax.fori_loop(0, n_chunks, score_step, 0, unroll=unroll)

    # ---- pass 2: exp + denominator + unnormalized pooling, all on the VPU ---
    # rq[b,:] = sum_t exp(s[t,b]-m[b]) * x[t,b,:]   (normalized afterwards)
    def pool_step(c, carry):
        r0 = pl.multiple_of(c * sc, sc)
        p = jnp.exp(s_ref[pl.ds(r0, sc), :, :] - m_ref[...])     # (sc, TB, 1)
        xc = x_ref[pl.ds(r0, sc), :, :].astype(jnp.float32)      # (sc, TB, Din)
        l_c = p[0]
        acc_c = p[0] * xc[0]
        for u in range(1, sc):
            l_c = l_c + p[u]
            acc_c = acc_c + p[u] * xc[u]
        l_ref[...] += l_c
        acc_ref[...] += acc_c
        return carry

    lax.fori_loop(0, n_chunks, pool_step, 0, unroll=unroll)

    # Normalize via the EUP approximate reciprocal (free slot).  Fully-masked
    # rows give NaN, matching torch masked_fill(-inf) + softmax.
    rq = acc_ref[...] * pl.reciprocal(l_ref[...], approx=True)   # (TB, Din) f32

    if apply_output_proj:
        rq = jnp.tanh(
            jnp.dot(rq.astype(o_w_ref.dtype), o_w_ref[...],
                    preferred_element_type=jnp.float32)
            + o_b_ref[...])                                      # (TB, Dh)

    out_ref[...] = rq.astype(out_ref.dtype)


def _derive_batch_tile(B, S, Din, Dh, out_dim, x_bytes, apply_o, budget_bytes):
    """VMEM-budget-derived batch tile (replaces the old hard-coded 256)."""
    # Replicated weights are double-buffered by the default pipeline even
    # though their block index never changes (pl.Buffered(1) would reclaim
    # this; kept off for portability).
    fixed = 2 * Din * Dh * x_bytes * (2 if apply_o else 1) + 2 * 4 * (3 * Dh + 8)
    per_b = (2 * S * Din * x_bytes     # x tile, double-buffered
             + 2 * S * 4               # int32 mask tile, double-buffered
             + S * 4                   # score scratch
             + Din * 4 + 8             # pooling accumulator + stats
             + 2 * out_dim * 4)        # f32 output tile, double-buffered
    tb = max(8, int((budget_bytes - fixed) // per_b))
    # Keep >= ~8 grid steps when the batch allows: feeds the software pipeline
    # and lets v7x shard the "parallel" batch axis across its two TensorCores.
    tb = min(tb, max(8, -(-B // 8)))
    if tb >= B:
        return B
    return max(8, (tb // 8) * 8)


def _derive_score_chunk(S, TB, sublane_align, target_rows=512):
    """Sequence positions per fused score chunk (~target_rows MXU rows)."""
    if TB % sublane_align != 0:
        return 1                       # keep in-kernel reshapes layout-free
    chunk = max(1, min(S, target_rows // TB))
    while S % chunk:                   # every chunk must be full
        chunk -= 1
    return chunk


def attention_pooling(question_vec, question_mask, params,
                      input_size, output_size, *,
                      batch_tile=None, score_chunk=None,
                      compute_dtype=jnp.float32,
                      vmem_budget_bytes=40 * 1024 * 1024):
    """Wrapper: layout plumbing in plain JAX, hot path in the Pallas kernel."""
    S, B, Din = question_vec.shape
    assert Din == input_size
    apply_o = input_size != output_size
    Dh = output_size
    out_dim = output_size if apply_o else input_size
    cbytes = jnp.dtype(compute_dtype).itemsize
    sublane_align = 8 * (4 // cbytes)  # 8 rows for f32, 16 for packed bf16

    # x stays in its native (S, B, Din) layout: the BlockSpec DMA reads the
    # (S, TB, Din) tile straight from HBM -- no extra XLA transpose round-trip
    # of the largest tensor.  Only the tiny mask is transposed, to (S, B, 1)
    # int32 so mask[t] lines up with the per-position score rows.
    x = question_vec.astype(compute_dtype)
    mask = jnp.transpose(question_mask.astype(jnp.int32)).reshape(S, B, 1)

    wq_w = params["wq_w"].astype(compute_dtype)                  # (Din, Dh)
    wq_b = params["wq_b"].reshape(1, Dh).astype(jnp.float32)
    v_w = params["v_w"].reshape(1, Dh).astype(jnp.float32)
    v_b = params["v_b"].reshape(1, 1).astype(jnp.float32)

    if batch_tile is None:
        batch_tile = _derive_batch_tile(B, S, Din, Dh, out_dim, cbytes,
                                        apply_o, vmem_budget_bytes)
    TB = int(min(batch_tile, B))
    if TB < B:                          # partial tiles must be sublane-aligned
        TB = max(8, (TB // 8) * 8)
    nb = pl.cdiv(B, TB)

    if score_chunk is None:
        score_chunk = _derive_score_chunk(S, TB, sublane_align)
    sc = max(1, int(score_chunk))
    if TB % sublane_align != 0:
        sc = 1
    sc = min(sc, S)
    while S % sc:
        sc -= 1

    in_specs = [
        pl.BlockSpec((S, TB, Din), lambda i: (0, i, 0)),      # x (no transpose)
        pl.BlockSpec((S, TB, 1), lambda i: (0, i, 0)),        # mask
        pl.BlockSpec((Din, Dh), lambda i: (0, 0)),            # wq_w (replicated)
        pl.BlockSpec((1, Dh), lambda i: (0, 0)),              # wq_b
        pl.BlockSpec((1, Dh), lambda i: (0, 0)),              # v_w
        pl.BlockSpec(memory_space=pltpu.MemorySpace.SMEM),    # v_b scalar
    ]
    args = [x, mask, wq_w, wq_b, v_w, v_b]
    if apply_o:
        in_specs += [pl.BlockSpec((Din, Dh), lambda i: (0, 0)),   # o_w
                     pl.BlockSpec((1, Dh), lambda i: (0, 0))]     # o_b
        args += [params["o_w"].astype(compute_dtype),
                 params["o_b"].reshape(1, Dh).astype(jnp.float32)]
    # else: no dummy o_w/o_b allocation, DMA, or VMEM residency.

    kernel = functools.partial(_attention_pooling_kernel,
                               apply_output_proj=apply_o, score_chunk=sc)

    return pl.pallas_call(
        kernel,
        out_shape=jax.ShapeDtypeStruct((B, out_dim), jnp.float32),
        grid=(nb,),
        in_specs=in_specs,
        out_specs=pl.BlockSpec((TB, out_dim), lambda i: (i, 0)),
        scratch_shapes=[
            pltpu.VMEM((S, TB, 1), jnp.float32),   # masked scores
            pltpu.VMEM((TB, 1), jnp.float32),      # running max
            pltpu.VMEM((TB, 1), jnp.float32),      # softmax denominator
            pltpu.VMEM((TB, Din), jnp.float32),    # pooling accumulator
        ],
        compiler_params=pltpu.CompilerParams(
            dimension_semantics=("parallel",),
            vmem_limit_bytes=48 * 1024 * 1024),
    )(*args)


def attention_pooling_reference(question_vec, question_mask, params,
                                input_size, output_size):
    """Pure-JAX reference mirroring the PyTorch forward."""
    wq = jnp.tanh(jnp.einsum("sbi,io->sbo", question_vec, params["wq_w"])
                  + params["wq_b"])
    s = (jnp.einsum("sbo,o->sb", wq, params["v_w"]) + params["v_b"]).T  # (B,S)
    s = jnp.where(question_mask == 0, -jnp.inf, s)
    alpha = jax.nn.softmax(s, axis=1)
    rq = jnp.einsum("bs,bsd->bd", alpha, jnp.transpose(question_vec, (1, 0, 2)))
    if input_size != output_size:
        rq = jnp.tanh(rq @ params["o_w"] + params["o_b"])
    return rq


if __name__ == "__main__":
    key = jax.random.PRNGKey(0)

    # --- Config 1: projection path (input_size != output_size), f32 compute --
    SEQ, BATCH, IN_SIZE, OUT_SIZE = 8, 2, 16, 32
    k_qv, k_wq, k_wqb, k_v, k_vb, k_o, k_ob, k2 = jax.random.split(key, 8)

    question_vec = jax.random.normal(k_qv, (SEQ, BATCH, IN_SIZE), jnp.float32)
    # mask: 1 = valid token, 0 = padding (second batch element has 3 pads)
    question_mask = jnp.array(
        [[1, 1, 1, 1, 1, 1, 1, 1],
         [1, 1, 1, 1, 1, 0, 0, 0]], dtype=jnp.float32)

    params = {
        "wq_w": 0.1 * jax.random.normal(k_wq, (IN_SIZE, OUT_SIZE), jnp.float32),
        "wq_b": 0.1 * jax.random.normal(k_wqb, (OUT_SIZE,), jnp.float32),
        "v_w": 0.1 * jax.random.normal(k_v, (OUT_SIZE,), jnp.float32),
        "v_b": 0.1 * jax.random.normal(k_vb, (), jnp.float32),
        "o_w": 0.1 * jax.random.normal(k_o, (IN_SIZE, OUT_SIZE), jnp.float32),
        "o_b": 0.1 * jax.random.normal(k_ob, (OUT_SIZE,), jnp.float32),
    }

    out = attention_pooling(question_vec, question_mask, params,
                            IN_SIZE, OUT_SIZE)
    out = jax.block_until_ready(out)
    ref = attention_pooling_reference(question_vec, question_mask, params,
                                      IN_SIZE, OUT_SIZE)
    assert out.shape == (BATCH, OUT_SIZE), out.shape
    assert jnp.allclose(out, ref, rtol=5e-3, atol=5e-3), (
        "config1 mismatch: max abs err "
        f"{jnp.max(jnp.abs(out - ref))}")

    # --- Config 2: identity path (no projection), bf16 compute, multi-step ---
    # batch grid (nb=2) and multi-chunk fused score loop (4 chunks of 64 rows).
    SEQ2, BATCH2, D2 = 16, 32, 32
    k_qv2, k_m2, k_wq2, k_wqb2, k_v2, k_vb2 = jax.random.split(k2, 6)
    q2 = jax.random.normal(k_qv2, (SEQ2, BATCH2, D2), jnp.float32)
    m2 = (jax.random.uniform(k_m2, (BATCH2, SEQ2)) > 0.3).astype(jnp.float32)
    m2 = m2.at[:, 0].set(1.0)   # keep every row at least one valid position
    params2 = {
        "wq_w": 0.1 * jax.random.normal(k_wq2, (D2, D2), jnp.float32),
        "wq_b": 0.1 * jax.random.normal(k_wqb2, (D2,), jnp.float32),
        "v_w": 0.1 * jax.random.normal(k_v2, (D2,), jnp.float32),
        "v_b": 0.1 * jax.random.normal(k_vb2, (), jnp.float32),
    }
    out2 = attention_pooling(q2, m2, params2, D2, D2,
                             batch_tile=16, score_chunk=4,
                             compute_dtype=jnp.bfloat16)
    out2 = jax.block_until_ready(out2)
    ref2 = attention_pooling_reference(q2, m2, params2, D2, D2)
    assert out2.shape == (BATCH2, D2), out2.shape
    assert jnp.allclose(out2, ref2, rtol=3e-2, atol=3e-2), (
        "config2 (bf16) mismatch: max abs err "
        f"{jnp.max(jnp.abs(out2 - ref2))}")

    print("KERNEL_OK")
</pallas_src>

<mosaic_0001>
module attributes {stable_mosaic.version = 11 : i64} {
  func.func @_attention_pooling_kernel(%arg0: i32, %arg1: memref<8x2x16xf32, #tpu.memory_space<vmem>>, %arg2: memref<8x2x1xi32, #tpu.memory_space<vmem>>, %arg3: memref<16x32xf32, #tpu.memory_space<vmem>>, %arg4: memref<1x32xf32, #tpu.memory_space<vmem>>, %arg5: memref<1x32xf32, #tpu.memory_space<vmem>>, %arg6: memref<1x1xf32, #tpu.memory_space<smem>>, %arg7: memref<16x32xf32, #tpu.memory_space<vmem>>, %arg8: memref<1x32xf32, #tpu.memory_space<vmem>>, %arg9: memref<2x32xf32, #tpu.memory_space<vmem>>, %arg10: memref<8x2x1xf32, #tpu.memory_space<vmem>>, %arg11: memref<2x1xf32, #tpu.memory_space<vmem>>, %arg12: memref<2x1xf32, #tpu.memory_space<vmem>>, %arg13: memref<2x16xf32, #tpu.memory_space<vmem>>) attributes {dimension_semantics = [#tpu.dimension_semantics<parallel>], iteration_bounds = array<i64: 1>, scalar_prefetch = 0 : i64, scratch_operands = 4 : i64, tpu.core_type = #tpu.core_type<tc>, window_params = [{transform_indices = @transform_0, window_bounds = array<i64: 8, 2, 16>}, {transform_indices = @transform_1, window_bounds = array<i64: 8, 2, 1>}, {pipeline_mode = #tpu.pipeline_mode<synchronous>, transform_indices = @transform_2, window_bounds = array<i64: 16, 32>}, {pipeline_mode = #tpu.pipeline_mode<synchronous>, transform_indices = @transform_3, window_bounds = array<i64: 1, 32>}, {pipeline_mode = #tpu.pipeline_mode<synchronous>, transform_indices = @transform_4, window_bounds = array<i64: 1, 32>}, {transform_indices = @transform_5, window_bounds = array<i64: 1, 1>}, {pipeline_mode = #tpu.pipeline_mode<synchronous>, transform_indices = @transform_6, window_bounds = array<i64: 16, 32>}, {pipeline_mode = #tpu.pipeline_mode<synchronous>, transform_indices = @transform_7, window_bounds = array<i64: 1, 32>}, {transform_indices = @transform_8, window_bounds = array<i64: 2, 32>}]} {
    %c0 = arith.constant 0 : index
    %c0_0 = arith.constant 0 : index
    %0 = vector.load %arg3[%c0, %c0_0] : memref<16x32xf32, #tpu.memory_space<vmem>>, vector<16x32xf32>
    %c0_1 = arith.constant 0 : index
    %c0_2 = arith.constant 0 : index
    %1 = vector.load %arg4[%c0_1, %c0_2] : memref<1x32xf32, #tpu.memory_space<vmem>>, vector<1x32xf32>
    %c0_3 = arith.constant 0 : index
    %c0_4 = arith.constant 0 : index
    %2 = vector.load %arg5[%c0_3, %c0_4] : memref<1x32xf32, #tpu.memory_space<vmem>>, vector<1x32xf32>
    %c0_5 = arith.constant 0 : index
    %c0_6 = arith.constant 0 : index
    %3 = memref.load %arg6[%c0_5, %c0_6] : memref<1x1xf32, #tpu.memory_space<smem>>
    %cst = arith.constant 0xFF800000 : f32
    %4 = vector.broadcast %cst : f32 to vector<2x1xf32>
    %c0_7 = arith.constant 0 : index
    %c0_8 = arith.constant 0 : index
    %5 = vector.load %arg11[%c0_7, %c0_8] : memref<2x1xf32, #tpu.memory_space<vmem>>, vector<2x1xf32>
    tpu.vector_store %arg11[%c0_7, %c0_8], %4 {strides = array<i32>} : memref<2x1xf32, #tpu.memory_space<vmem>>, vector<2x1xf32>,
    %cst_9 = arith.constant 0.000000e+00 : f32
    %6 = vector.broadcast %cst_9 : f32 to vector<2x1xf32>
    %c0_10 = arith.constant 0 : index
    %c0_11 = arith.constant 0 : index
    %7 = vector.load %arg12[%c0_10, %c0_11] : memref<2x1xf32, #tpu.memory_space<vmem>>, vector<2x1xf32>
    tpu.vector_store %arg12[%c0_10, %c0_11], %6 {strides = array<i32>} : memref<2x1xf32, #tpu.memory_space<vmem>>, vector<2x1xf32>,
    %cst_12 = arith.constant 0.000000e+00 : f32
    %8 = vector.broadcast %cst_12 : f32 to vector<2x16xf32>
    %c0_13 = arith.constant 0 : index
    %c0_14 = arith.constant 0 : index
    %9 = vector.load %arg13[%c0_13, %c0_14] : memref<2x16xf32, #tpu.memory_space<vmem>>, vector<2x16xf32>
    tpu.vector_store %arg13[%c0_13, %c0_14], %8 {strides = array<i32>} : memref<2x16xf32, #tpu.memory_space<vmem>>, vector<2x16xf32>,
    %cst_15 = arith.constant 0xFF800000 : f32
    %c0_i32 = arith.constant 0 : i32
    %c8_i32 = arith.constant 8 : i32
    %10 = arith.addi %c0_i32, %c8_i32 : i32
    %c1_i32 = arith.constant 1 : i32
    scf.for %arg14 = %c0_i32 to %10 step %c1_i32  : i32 {
      %c1_i32_32 = arith.constant 1 : i32
      %24 = arith.muli %arg14, %c1_i32_32 : i32
      %25 = tpu.assume_multiple %24, 1 : i32
      %26 = arith.index_cast %25 : i32 to index
      %c0_33 = arith.constant 0 : index
      %c0_34 = arith.constant 0 : index
      %27 = vector.load %arg1[%26, %c0_33, %c0_34] : memref<8x2x16xf32, #tpu.memory_space<vmem>>, vector<1x2x16xf32>
      %28 = vector.shape_cast %27 : vector<1x2x16xf32> to vector<2x16xf32>
      %cst_35 = arith.constant dense<0.000000e+00> : vector<2x32xf32>
      %29 = tpu.matmul %28, %0, %cst_35 {dimension_numbers = #tpu.dot_dimension_numbers<[1], [0], [0], [1], [0, 0, 1, 1], [], []>} : vector<2x16xf32>, vector<16x32xf32>, vector<2x32xf32> -> vector<2x32xf32>
      %30 = vector.broadcast %1 : vector<1x32xf32> to vector<2x32xf32>
      %31 = arith.addf %29, %30 : vector<2x32xf32>
      %32 = math.tanh %31 : vector<2x32xf32>
      %33 = vector.broadcast %2 : vector<1x32xf32> to vector<2x32xf32>
      %34 = arith.mulf %32, %33 : vector<2x32xf32>
      %cst_36 = arith.constant dense<0.000000e+00> : vector<2xf32>
      %35 = vector.multi_reduction <add>, %34, %cst_36 [1] : vector<2x32xf32> to vector<2xf32>
      %36 = vector.shape_cast %35 : vector<2xf32> to vector<2x1xf32>
      %37 = vector.broadcast %3 : f32 to vector<2x1xf32>
      %38 = arith.addf %36, %37 : vector<2x1xf32>
      %39 = vector.shape_cast %38 : vector<2x1xf32> to vector<1x2x1xf32>
      %40 = arith.index_cast %25 : i32 to index
      %c0_37 = arith.constant 0 : index
      %c0_38 = arith.constant 0 : index
      %41 = vector.load %arg2[%40, %c0_37, %c0_38] : memref<8x2x1xi32, #tpu.memory_space<vmem>>, vector<1x2x1xi32>
      %c0_i32_39 = arith.constant 0 : i32
      %42 = vector.broadcast %c0_i32_39 : i32 to vector<1x2x1xi32>
      %43 = arith.cmpi eq, %41, %42 : vector<1x2x1xi32>
      %44 = vector.broadcast %cst_15 : f32 to vector<1x2x1xf32>
      %45 = arith.select %43, %44, %39 : vector<1x2x1xi1>, vector<1x2x1xf32>
      %46 = arith.index_cast %25 : i32 to index
      %c0_40 = arith.constant 0 : index
      %c0_41 = arith.constant 0 : index
      %47 = vector.load %arg10[%46, %c0_40, %c0_41] : memref<8x2x1xf32, #tpu.memory_space<vmem>>, vector<1x2x1xf32>
      tpu.vector_store %arg10[%46, %c0_40, %c0_41], %45 {strides = array<i32>} : memref<8x2x1xf32, #tpu.memory_space<vmem>>, vector<1x2x1xf32>,
      %48 = vector.shape_cast %45 : vector<1x2x1xf32> to vector<2x1xf32>
      %c0_42 = arith.constant 0 : index
      %c0_43 = arith.constant 0 : index
      %49 = vector.load %arg11[%c0_42, %c0_43] : memref<2x1xf32, #tpu.memory_space<vmem>>, vector<2x1xf32>
      %50 = arith.maximumf %49, %48 : vector<2x1xf32>
      %c0_44 = arith.constant 0 : index
      %c0_45 = arith.constant 0 : index
      %51 = vector.load %arg11[%c0_44, %c0_45] : memref<2x1xf32, #tpu.memory_space<vmem>>, vector<2x1xf32>
      tpu.vector_store %arg11[%c0_44, %c0_45], %50 {strides = array<i32>} : memref<2x1xf32, #tpu.memory_space<vmem>>, vector<2x1xf32>,
    }
    %c8_i32_16 = arith.constant 8 : i32
    %c0_i32_17 = arith.constant 0 : i32
    %c8_i32_18 = arith.constant 8 : i32
    %11 = arith.addi %c0_i32_17, %c8_i32_18 : i32
    %c1_i32_19 = arith.constant 1 : i32
    scf.for %arg14 = %c0_i32_17 to %11 step %c1_i32_19  : i32 {
      %c1_i32_32 = arith.constant 1 : i32
      %24 = arith.muli %arg14, %c1_i32_32 : i32
      %25 = tpu.assume_multiple %24, 1 : i32
      %26 = arith.index_cast %25 : i32 to index
      %c0_33 = arith.constant 0 : index
      %c0_34 = arith.constant 0 : index
      %27 = vector.load %arg10[%26, %c0_33, %c0_34] : memref<8x2x1xf32, #tpu.memory_space<vmem>>, vector<1x2x1xf32>
      %c0_35 = arith.constant 0 : index
      %c0_36 = arith.constant 0 : index
      %28 = vector.load %arg11[%c0_35, %c0_36] : memref<2x1xf32, #tpu.memory_space<vmem>>, vector<2x1xf32>
      %29 = vector.shape_cast %28 : vector<2x1xf32> to vector<1x2x1xf32>
      %30 = arith.subf %27, %29 : vector<1x2x1xf32>
      %31 = math.exp %30 : vector<1x2x1xf32>
      %32 = arith.index_cast %25 : i32 to index
      %c0_37 = arith.constant 0 : index
      %c0_38 = arith.constant 0 : index
      %33 = vector.load %arg1[%32, %c0_37, %c0_38] : memref<8x2x16xf32, #tpu.memory_space<vmem>>, vector<1x2x16xf32>
      %34 = vector.shape_cast %31 : vector<1x2x1xf32> to vector<2x1xf32>
      %35 = vector.shape_cast %31 : vector<1x2x1xf32> to vector<2x1xf32>
      %36 = vector.shape_cast %33 : vector<1x2x16xf32> to vector<2x16xf32>
      %37 = vector.broadcast %35 : vector<2x1xf32> to vector<2x16xf32>
      %38 = arith.mulf %37, %36 : vector<2x16xf32>
      %c0_39 = arith.constant 0 : index
      %c0_40 = arith.constant 0 : index
      %39 = vector.load %arg12[%c0_39, %c0_40] : memref<2x1xf32, #tpu.memory_space<vmem>>, vector<2x1xf32>
      %40 = arith.addf %39, %34 : vector<2x1xf32>
      %c0_41 = arith.constant 0 : index
      %c0_42 = arith.constant 0 : index
      %41 = vector.load %arg12[%c0_41, %c0_42] : memref<2x1xf32, #tpu.memory_space<vmem>>, vector<2x1xf32>
      tpu.vector_store %arg12[%c0_41, %c0_42], %40 {strides = array<i32>} : memref<2x1xf32, #tpu.memory_space<vmem>>, vector<2x1xf32>,
      %c0_43 = arith.constant 0 : index
      %c0_44 = arith.constant 0 : index
      %42 = vector.load %arg13[%c0_43, %c0_44] : memref<2x16xf32, #tpu.memory_space<vmem>>, vector<2x16xf32>
      %43 = arith.addf %42, %38 : vector<2x16xf32>
      %c0_45 = arith.constant 0 : index
      %c0_46 = arith.constant 0 : index
      %44 = vector.load %arg13[%c0_45, %c0_46] : memref<2x16xf32, #tpu.memory_space<vmem>>, vector<2x16xf32>
      tpu.vector_store %arg13[%c0_45, %c0_46], %43 {strides = array<i32>} : memref<2x16xf32, #tpu.memory_space<vmem>>, vector<2x16xf32>,
    }
    %c8_i32_20 = arith.constant 8 : i32
    %c0_21 = arith.constant 0 : index
    %c0_22 = arith.constant 0 : index
    %12 = vector.load %arg13[%c0_21, %c0_22] : memref<2x16xf32, #tpu.memory_space<vmem>>, vector<2x16xf32>
    %c0_23 = arith.constant 0 : index
    %c0_24 = arith.constant 0 : index
    %13 = vector.load %arg12[%c0_23, %c0_24] : memref<2x1xf32, #tpu.memory_space<vmem>>, vector<2x1xf32>
    %14 = tpu.reciprocal %13 {approx = true} : vector<2x1xf32> -> vector<2x1xf32>
    %15 = vector.broadcast %14 : vector<2x1xf32> to vector<2x16xf32>
    %16 = arith.mulf %12, %15 : vector<2x16xf32>
    %c0_25 = arith.constant 0 : index
    %c0_26 = arith.constant 0 : index
    %17 = vector.load %arg7[%c0_25, %c0_26] : memref<16x32xf32, #tpu.memory_space<vmem>>, vector<16x32xf32>
    %cst_27 = arith.constant dense<0.000000e+00> : vector<2x32xf32>
    %18 = tpu.matmul %16, %17, %cst_27 {dimension_numbers = #tpu.dot_dimension_numbers<[1], [0], [0], [1], [0, 0, 1, 1], [], []>} : vector<2x16xf32>, vector<16x32xf32>, vector<2x32xf32> -> vector<2x32xf32>
    %c0_28 = arith.constant 0 : index
    %c0_29 = arith.constant 0 : index
    %19 = vector.load %arg8[%c0_28, %c0_29] : memref<1x32xf32, #tpu.memory_space<vmem>>, vector<1x32xf32>
    %20 = vector.broadcast %19 : vector<1x32xf32> to vector<2x32xf32>
    %21 = arith.addf %18, %20 : vector<2x32xf32>
    %22 = math.tanh %21 : vector<2x32xf32>
    %c0_30 = arith.constant 0 : index
    %c0_31 = arith.constant 0 : index
    %23 = vector.load %arg9[%c0_30, %c0_31] : memref<2x32xf32, #tpu.memory_space<vmem>>, vector<2x32xf32>
    tpu.vector_store %arg9[%c0_30, %c0_31], %22 {strides = array<i32>} : memref<2x32xf32, #tpu.memory_space<vmem>>, vector<2x32xf32>,
    return
  }
  func.func @transform_0(%arg0: i32) -> (i32, i32, i32) {
    %c0_i32 = arith.constant 0 : i32
    %c0_i32_0 = arith.constant 0 : i32
    %c0_i32_1 = arith.constant 0 : i32
    return %c0_i32, %arg0, %c0_i32_0 : i32, i32, i32
  }
  func.func @transform_1(%arg0: i32) -> (i32, i32, i32) {
    %c0_i32 = arith.constant 0 : i32
    %c0_i32_0 = arith.constant 0 : i32
    %c0_i32_1 = arith.constant 0 : i32
    return %c0_i32, %arg0, %c0_i32_0 : i32, i32, i32
  }
  func.func @transform_2(%arg0: i32) -> (i32, i32) {
    %c0_i32 = arith.constant 0 : i32
    %c0_i32_0 = arith.constant 0 : i32
    %c0_i32_1 = arith.constant 0 : i32
    return %c0_i32, %c0_i32_0 : i32, i32
  }
  func.func @transform_3(%arg0: i32) -> (i32, i32) {
    %c0_i32 = arith.constant 0 : i32
    %c0_i32_0 = arith.constant 0 : i32
    %c0_i32_1 = arith.constant 0 : i32
    return %c0_i32, %c0_i32_0 : i32, i32
  }
  func.func @transform_4(%arg0: i32) -> (i32, i32) {
    %c0_i32 = arith.constant 0 : i32
    %c0_i32_0 = arith.constant 0 : i32
    %c0_i32_1 = arith.constant 0 : i32
    return %c0_i32, %c0_i32_0 : i32, i32
  }
  func.func @transform_5(%arg0: i32) -> (i32, i32) {
    %c0_i32 = arith.constant 0 : i32
    %c0_i32_0 = arith.constant 0 : i32
    %c0_i32_1 = arith.constant 0 : i32
    return %c0_i32, %c0_i32_0 : i32, i32
  }
  func.func @transform_6(%arg0: i32) -> (i32, i32) {
    %c0_i32 = arith.constant 0 : i32
    %c0_i32_0 = arith.constant 0 : i32
    %c0_i32_1 = arith.constant 0 : i32
    return %c0_i32, %c0_i32_0 : i32, i32
  }
  func.func @transform_7(%arg0: i32) -> (i32, i32) {
    %c0_i32 = arith.constant 0 : i32
    %c0_i32_0 = arith.constant 0 : i32
    %c0_i32_1 = arith.constant 0 : i32
    return %c0_i32, %c0_i32_0 : i32, i32
  }
  func.func @transform_8(%arg0: i32) -> (i32, i32) {
    %c0_i32 = arith.constant 0 : i32
    %c0_i32_0 = arith.constant 0 : i32
    return %arg0, %c0_i32 : i32, i32
  }
}

</mosaic_0001>

<llo_original>
// kernel: tpu_custom_call.1
$region0: #{tpu_custom_call.1}
  #allocation0 [shape = 'u32[]', space=smem, size = 0x4, offset = 0x4, fixed_abs, tag = 'smem constant byte address 0x4 - core index']
  #allocation1 [shape = 'u32[144,128]{1,0:T(1,128)}', space=vmem, size = 0x12000, scoped, tag = 'internal scratch']
  #allocation2 [shape = 'f32[8,2,1]{2,1,0:T(2,128)}', space=vmem, size = 0x2000, scoped, tag = 'scratch operand']
  #allocation3 [shape = 'f32[2,1]{1,0:T(2,128)}', space=vmem, size = 0x400, scoped, tag = 'scratch operand']
  #allocation4 [shape = 'f32[2,1]{1,0:T(2,128)}', space=vmem, size = 0x400, scoped, tag = 'scratch operand']
  #allocation5 [shape = 'f32[2,16]{1,0:T(2,128)}', space=vmem, size = 0x400, scoped, tag = 'scratch operand']
  #allocation6 [shape = 'f32[1,1]{1,0:T(1,128)S(6)}', space=smem, size = 0x200, scoped, tag = 'scoped memory for tpu_custom_call.1']
  %s0 = inlined_call_operand.vmem [shape: f32[8,2,16], index: 0, kind: input, shape index: {}]
  %s1 = inlined_call_operand.vmem [shape: s32[8,2,1], index: 1, kind: input, shape index: {}]
  %s2 = inlined_call_operand.hbm [shape: f32[16,32], index: 2, kind: input, shape index: {}]
  %s3 = inlined_call_operand.vmem [shape: f32[1,32], index: 3, kind: input, shape index: {}]
  %s4 = inlined_call_operand.vmem [shape: f32[1,32], index: 4, kind: input, shape index: {}]
  %s5 = inlined_call_operand.<no memory space> [shape: f32[1,1], index: 5, kind: input, shape index: {}]
  %s6 = inlined_call_operand.vmem [shape: f32[16,32], index: 6, kind: input, shape index: {}]
  %s7 = inlined_call_operand.vmem [shape: f32[1,32], index: 7, kind: input, shape index: {}]
  %s8 = inlined_call_operand.hbm [shape: f32[2,32], index: 8, kind: output, shape index: {}]
  %s9 = sld [smem:[#allocation0]]
  $region60: #{tpu_custom_call.1} parent=0
    _
  %s11 = ssub.s32 1, %s9
  %s12 = scalar_select 0, %s11, %s9
  %13 = sst [smem:[#allocation6]] %s5
  $region1: #{tpu_custom_call.1} parent=0
    #allocation7 [shape = 'u8[8192]{0}', space=vmem, size = 0x2000, scoped, tag = 'input window, operand 2, single buffered']
    #allocation8 [shape = 's32[1]{0}', space=sflag, size = 0x4, scoped, tag = 'scoped memory for tpu_custom_call.1']
    #allocation9 [shape = 's32[1]{0}', space=sflag, size = 0x4, scoped, tag = 'scoped memory for tpu_custom_call.1']
    #allocation10 [shape = 'u8[1024]{0}', space=vmem, size = 0x400, scoped, tag = 'output window, operand 0, single buffered']
    %14 = vsyncpa [#allocation8], 0
    %15 = vsyncpa [#allocation9], 0
    // Predicated region
    $region2: #{tpu_custom_call.1} parent=1 // pred_check
      _
    $region3: #{tpu_custom_call.1} parent=1 // pred_check_branch
      %17 = sbr.rel (0) target = $region5
    $region4: #{tpu_custom_call.1} parent=1 // pred_region
      _
    $region5: #{tpu_custom_call.1} parent=1 // pred_fallthru
      _
    // Predicated region
    $region6: #{tpu_custom_call.1} parent=1 // pred_check
      _
    $region7: #{tpu_custom_call.1} parent=1 // pred_check_branch
      %19 = sbr.rel (0) target = $region9
    $region8: #{tpu_custom_call.1} parent=1 // pred_region
      _
    $region9: #{tpu_custom_call.1} parent=1 // pred_fallthru
      _
    // Predicated region
    $region10: #{tpu_custom_call.1} parent=1 // pred_check
      _
    $region11: #{tpu_custom_call.1} parent=1 // pred_check_branch
      %21 = sbr.rel (0) target = $region13
    $region12: #{tpu_custom_call.1} parent=1 // pred_region
      %s23 = ssub.s32 256, 256
      %24 = vsyncadd [#allocation8], %s23
      %s25 = sshll.u32 [#allocation7], 4
      %s26 = int_to_ptr.vmem [resolvable:$true] %s25
      %31 = dma.hbm_to_vmem [thread:$0]  %s2, 256, %s26, [#allocation8], 128, 128, 8
    $region13: #{tpu_custom_call.1} parent=1 // pred_fallthru
      _
    // Predicated region
    $region14: #{tpu_custom_call.1} parent=1 // pred_check
      _
    $region15: #{tpu_custom_call.1} parent=1 // pred_check_branch
      %33 = sbr.rel (0) target = $region17
    $region16: #{tpu_custom_call.1} parent=1 // pred_region
      _
    $region17: #{tpu_custom_call.1} parent=1 // pred_fallthru
      _
    // Predicated region
    $region18: #{tpu_custom_call.1} parent=1 // pred_check
      _
    $region19: #{tpu_custom_call.1} parent=1 // pred_check_branch
      %35 = sbr.rel (0) target = $region21
    $region20: #{tpu_custom_call.1} parent=1 // pred_region
      _
    $region21: #{tpu_custom_call.1} parent=1 // pred_fallthru
      _
    // Predicated region
    $region22: #{tpu_custom_call.1} parent=1 // pred_check
      _
    $region23: #{tpu_custom_call.1} parent=1 // pred_check_branch
      %37 = sbr.rel (0) target = $region25
    $region24: #{tpu_custom_call.1} parent=1 // pred_region
      _
    $region25: #{tpu_custom_call.1} parent=1 // pred_fallthru
      _
    // Predicated region
    $region26: #{tpu_custom_call.1} parent=1 // pred_check
      _
    $region27: #{tpu_custom_call.1} parent=1 // pred_check_branch
      %39 = sbr.rel (0) target = $region29
    $region28: #{tpu_custom_call.1} parent=1 // pred_region
      _
    $region29: #{tpu_custom_call.1} parent=1 // pred_fallthru
      _
    // Predicated region
    $region30: #{tpu_custom_call.1} parent=1 // pred_check
      _
    $region31: #{tpu_custom_call.1} parent=1 // pred_check_branch
      %41 = sbr.rel (0) target = $region33
    $region32: #{tpu_custom_call.1} parent=1 // pred_region
      _
    $region33: #{tpu_custom_call.1} parent=1 // pred_fallthru
      _
    // Predicated region
    $region34: #{tpu_custom_call.1} parent=1 // pred_check
      _
    $region35: #{tpu_custom_call.1} parent=1 // pred_check_branch
      %43 = sbr.rel (0) target = $region37
    $region36: #{tpu_custom_call.1} parent=1 // pred_region
      %44 = dma.done [#allocation8], 256
    $region37: #{tpu_custom_call.1} parent=1 // pred_fallthru
      _
    %v45 = vld [vmem:[#allocation7] sm:$0xff]
    %v46 = vld [vmem:[#allocation7 + $0x8] sm:$0xff]
    %v47 = vld [vmem:[%s3] sm:$0x1]
    %v48 = vld [vmem:[%s4] sm:$0x1]
    %s49 = sld [smem:[#allocation6]]
    %vm50 = vcmask 1024
    %51 = vst.msk [vmem:[#allocation3] sm:$0x3] %vm50, -inf
    %52 = vst.msk [vmem:[#allocation4] sm:$0x3] %vm50, 0.0
    %vm53 = vcmask 123904
    %54 = vst.msk [vmem:[#allocation5] sm:$0x3] %vm53, 0.0
    loop: start=0, step=1, limit=8
    $region38: #{tpu_custom_call.1} parent=1 // loop_pre_header
      _
    $region39: #{tpu_custom_call.1} parent=1 // loop_header
      %s56 = sphi 0, %s60
      %p57 = scmp.ge.s32.totalorder %s56, 8
    $region40: #{tpu_custom_call.1} parent=1 // loop_header_branch
      %59 = sbr.rel (%p57) target = $region44
    $region41: #{tpu_custom_call.1} parent=1 // loop_body
      %s61 = smul.u32 %s56, 2
      %s62 = scalar_lea.vmem %s0, %s61
      %v63 = vld [vmem:[%s62] sm:$0x3]
      %v65 = vlaneseq
      %v66 = vshrl.u32 %v65, 7
      %v67 = vsub.s32 0, %v66
      %v68 = vrot.slane %v47, %v67
      %vm70 = vcmask 130048
      %v72 = vsel %vm70, %v63, 0
      %74 = vmatprep.subr.mxu0 0.0
      %75 = vmatpush1.msra.mxu0 %v45
      %76 = vmatprep.subr.mxu0 0.0
      %77 = vmatpush1.msra.mxu0 %v46
      %78 = vmatprep.subr.mxu0 0.0
      %79 = vmatpush1.msra.mxu0 0.0
      %80 = vmatprep.subr.mxu0 0.0
      %81 = vmatpush1.msra.mxu0 0.0
      %82 = vmatprep.subr.mxu0 0.0
      %83 = vmatpush1.msra.mxu0 0.0
      %84 = vmatprep.subr.mxu0 0.0
      %85 = vmatpush1.msra.mxu0 0.0
      %86 = vmatprep.subr.mxu0 0.0
      %87 = vmatpush1.msra.mxu0 0.0
      %88 = vmatprep.subr.mxu0 0.0
      %89 = vmatpush1.msra.mxu0 0.0
      %90 = vmatprep.subr.mxu0 0.0
      %91 = vmatpush1.msra.mxu0 0.0
      %92 = vmatprep.subr.mxu0 0.0
      %93 = vmatpush1.msra.mxu0 0.0
      %94 = vmatprep.subr.mxu0 0.0
      %95 = vmatpush1.msra.mxu0 0.0
      %96 = vmatprep.subr.mxu0 0.0
      %97 = vmatpush1.msra.mxu0 0.0
      %98 = vmatprep.subr.mxu0 0.0
      %99 = vmatpush1.msra.mxu0 0.0
      %100 = vmatprep.subr.mxu0 0.0
      %101 = vmatpush1.msra.mxu0 0.0
      %102 = vmatprep.subr.mxu0 0.0
      %103 = vmatpush1.msra.mxu0 0.0
      %104 = vmatprep.subr.mxu0 0.0
      %105 = vmatpush1.msra.mxu0 0.0
      %106 = vmatprep.subr.mxu0 0.0
      %107 = vmatpush1.msra.mxu0 0.0
      %108 = vmatprep.subr.mxu0 0.0
      %109 = vmatpush1.msra.mxu0 0.0
      %110 = vmatprep.subr.mxu0 0.0
      %111 = vmatpush1.msra.mxu0 0.0
      %112 = vmatprep.subr.mxu0 0.0
      %113 = vmatpush1.msra.mxu0 0.0
      %114 = vmatprep.subr.mxu0 0.0
      %115 = vmatpush1.msra.mxu0 0.0
      %116 = vmatprep.subr.mxu0 0.0
      %117 = vmatpush1.msra.mxu0 0.0
      %118 = vmatprep.subr.mxu0 0.0
      %119 = vmatpush1.msra.mxu0 0.0
      %120 = vmatprep.subr.mxu0 0.0
      %121 = vmatpush1.msra.mxu0 0.0
      %122 = vmatprep.subr.mxu0 0.0
      %123 = vmatpush1.msra.mxu0 0.0
      %124 = vmatprep.subr.mxu0 0.0
      %125 = vmatpush1.msra.mxu0 0.0
      %126 = vmatprep.subr.mxu0 0.0
      %127 = vmatpush1.msra.mxu0 0.0
      %128 = vmatprep.subr.mxu0 0.0
      %129 = vmatpush1.msra.mxu0 0.0
      %130 = vmatprep.subr.mxu0 0.0
      %131 = vmatpush1.msra.mxu0 0.0
      %132 = vmatprep.subr.mxu0 0.0
      %133 = vmatpush1.msra.mxu0 0.0
      %134 = vmatprep.subr.mxu0 0.0
      %135 = vmatpush1.msra.mxu0 0.0
      %136 = vmatprep.subr.mxu0 0.0
      %137 = vmatpush1.msra.mxu0 0.0
      %138 = vmatprep.mubr.f32.mxu0 0.0
      %139 = vmatmul.mubr.f32.gmra.mrb[0].mxu0 %v72
      %v140 = vpop.f32.mrb[0].mxu0
      %v141 = vadd.f32 %v68, %v140
      %v142 = vpop.f32.mrb[0].mxu0
      %143 = vdwg.mxu0
      %v144 = vtanh.pop %v141
      %v146 = vlaneseq
      %v147 = vshrl.u32 %v146, 7
      %v148 = vsub.s32 0, %v147
      %v149 = vrot.slane %v48, %v148
      %v151 = vmul.f32 %v144, %v149
      %vm152 = vcmask 254976
      %v153 = vsel %vm152, %v151, 0.0
      %154 = vadd.xlane.f32.xlu0 %v153
      %v155 = vpop.xlane.xlu0 %154
      %v156 = vstv %s49
      %v157 = vadd.f32 %v155, %v156
      %s158 = scalar_lea.vmem %s1, %s61
      %v159 = vld [vmem:[%s158] sm:$0x3]
      %vm160 = vcmp.eq.s32.totalorder %v159, 0
      %v161 = vsel %vm160, -inf, %v157
      %s162 = scalar_lea.vmem [#allocation2], %s61
      %163 = vst.msk [vmem:[%s162] sm:$0x3] %vm50, %v161
      %v164 = vld [vmem:[#allocation3] sm:$0x3]
      %v165 = vmax.f32 %v164, %v161
      %166 = vst.msk [vmem:[#allocation3] sm:$0x3] %vm50, %v165
    $region42: #{tpu_custom_call.1} parent=1 // loop_footer
      %s60 = sadd.s32 1, %s56
    $region43: #{tpu_custom_call.1} parent=1 // loop_footer_branch
      %55 = sbr.rel target = $region39
    $region44: #{tpu_custom_call.1} parent=1 // loop_exit
      _
    loop: start=0, step=1, limit=8
    $region45: #{tpu_custom_call.1} parent=1 // loop_pre_header
      _
    $region46: #{tpu_custom_call.1} parent=1 // loop_header
      %s168 = sphi 0, %s172
      %p169 = scmp.ge.s32.totalorder %s168, 8
    $region47: #{tpu_custom_call.1} parent=1 // loop_header_branch
      %171 = sbr.rel (%p169) target = $region51
    $region48: #{tpu_custom_call.1} parent=1 // loop_body
      %s173 = smul.u32 %s168, 2
      %s174 = scalar_lea.vmem [#allocation2], %s173
      %v175 = vld [vmem:[%s174] sm:$0x3]
      %v176 = vld [vmem:[#allocation3] sm:$0x3]
      %v177 = vsub.f32 %v175, %v176
      %v178 = vmul.f32 %v177, 1.442695
      %v179 = vpow.pop %v178
      %s180 = scalar_lea.vmem %s0, %s173
      %v181 = vld [vmem:[%s180] sm:$0x3]
      %183 = vset.pattern.permute.xlu0 0
      %184 = vperm.xlu0 %183, %v179
      %v185 = vpop.permute.xlu0 %184
      %v187 = vmul.f32 %v185, %v181
      %v188 = vld [vmem:[#allocation4] sm:$0x3]
      %v189 = vadd.f32 %v188, %v179
      %190 = vst.msk [vmem:[#allocation4] sm:$0x3] %vm50, %v189
      %v191 = vld [vmem:[#allocation5] sm:$0x3]
      %v192 = vadd.f32 %v191, %v187
      %193 = vst.msk [vmem:[#allocation5] sm:$0x3] %vm53, %v192
    $region49: #{tpu_custom_call.1} parent=1 // loop_footer
      %s172 = sadd.s32 1, %s168
    $region50: #{tpu_custom_call.1} parent=1 // loop_footer_branch
      %167 = sbr.rel target = $region46
    $region51: #{tpu_custom_call.1} parent=1 // loop_exit
      _
    %v194 = vld [vmem:[#allocation5] sm:$0x3]
    %v195 = vld [vmem:[#allocation4] sm:$0x3]
    %v196 = vrcp.pop %v195
    %198 = vset.pattern.permute.xlu0 0
    %199 = vperm.xlu0 %198, %v196
    %v200 = vpop.permute.xlu0 %199
    %v202 = vmul.f32 %v194, %v200
    %v203 = vld [vmem:[%s6] sm:$0xff]
    %v204 = vld [vmem:[%s6 + $0x8] sm:$0xff]
    %v205 = vld [vmem:[%s7] sm:$0x1]
    %v207 = vlaneseq
    %v208 = vshrl.u32 %v207, 7
    %v209 = vsub.s32 0, %v208
    %v210 = vrot.slane %v205, %v209
    %vm212 = vcmask 130048
    %v214 = vsel %vm212, %v202, 0
    %216 = vmatprep.subr.mxu0 0.0
    %217 = vmatpush1.msra.mxu0 %v203
    %218 = vmatprep.subr.mxu0 0.0
    %219 = vmatpush1.msra.mxu0 %v204
    %220 = vmatprep.subr.mxu0 0.0
    %221 = vmatpush1.msra.mxu0 0.0
    %222 = vmatprep.subr.mxu0 0.0
    %223 = vmatpush1.msra.mxu0 0.0
    %224 = vmatprep.subr.mxu0 0.0
    %225 = vmatpush1.msra.mxu0 0.0
    %226 = vmatprep.subr.mxu0 0.0
    %227 = vmatpush1.msra.mxu0 0.0
    %228 = vmatprep.subr.mxu0 0.0
    %229 = vmatpush1.msra.mxu0 0.0
    %230 = vmatprep.subr.mxu0 0.0
    %231 = vmatpush1.msra.mxu0 0.0
    %232 = vmatprep.subr.mxu0 0.0
    %233 = vmatpush1.msra.mxu0 0.0
    %234 = vmatprep.subr.mxu0 0.0
    %235 = vmatpush1.msra.mxu0 0.0
    %236 = vmatprep.subr.mxu0 0.0
    %237 = vmatpush1.msra.mxu0 0.0
    %238 = vmatprep.subr.mxu0 0.0
    %239 = vmatpush1.msra.mxu0 0.0
    %240 = vmatprep.subr.mxu0 0.0
    %241 = vmatpush1.msra.mxu0 0.0
    %242 = vmatprep.subr.mxu0 0.0
    %243 = vmatpush1.msra.mxu0 0.0
    %244 = vmatprep.subr.mxu0 0.0
    %245 = vmatpush1.msra.mxu0 0.0
    %246 = vmatprep.subr.mxu0 0.0
    %247 = vmatpush1.msra.mxu0 0.0
    %248 = vmatprep.subr.mxu0 0.0
    %249 = vmatpush1.msra.mxu0 0.0
    %250 = vmatprep.subr.mxu0 0.0
    %251 = vmatpush1.msra.mxu0 0.0
    %252 = vmatprep.subr.mxu0 0.0
    %253 = vmatpush1.msra.mxu0 0.0
    %254 = vmatprep.subr.mxu0 0.0
    %255 = vmatpush1.msra.mxu0 0.0
    %256 = vmatprep.subr.mxu0 0.0
    %257 = vmatpush1.msra.mxu0 0.0
    %258 = vmatprep.subr.mxu0 0.0
    %259 = vmatpush1.msra.mxu0 0.0
    %260 = vmatprep.subr.mxu0 0.0
    %261 = vmatpush1.msra.mxu0 0.0
    %262 = vmatprep.subr.mxu0 0.0
    %263 = vmatpush1.msra.mxu0 0.0
    %264 = vmatprep.subr.mxu0 0.0
    %265 = vmatpush1.msra.mxu0 0.0
    %266 = vmatprep.subr.mxu0 0.0
    %267 = vmatpush1.msra.mxu0 0.0
    %268 = vmatprep.subr.mxu0 0.0
    %269 = vmatpush1.msra.mxu0 0.0
    %270 = vmatprep.subr.mxu0 0.0
    %271 = vmatpush1.msra.mxu0 0.0
    %272 = vmatprep.subr.mxu0 0.0
    %273 = vmatpush1.msra.mxu0 0.0
    %274 = vmatprep.subr.mxu0 0.0
    %275 = vmatpush1.msra.mxu0 0.0
    %276 = vmatprep.subr.mxu0 0.0
    %277 = vmatpush1.msra.mxu0 0.0
    %278 = vmatprep.subr.mxu0 0.0
    %279 = vmatpush1.msra.mxu0 0.0
    %280 = vmatprep.mubr.f32.mxu0 0.0
    %281 = vmatmul.mubr.f32.gmra.mrb[0].mxu0 %v214
    %v282 = vpop.f32.mrb[0].mxu0
    %v283 = vadd.f32 %v210, %v282
    %v284 = vpop.f32.mrb[0].mxu0
    %285 = vdwg.mxu0
    %v286 = vtanh.pop %v283
    %vm287 = vcmask 254976
    %288 = vst.msk [vmem:[#allocation10] sm:$0x3] %vm287, %v286
    // Predicated region
    $region52: #{tpu_custom_call.1} parent=1 // pred_check
      _
    $region53: #{tpu_custom_call.1} parent=1 // pred_check_branch
      %290 = sbr.rel (0) target = $region55
    $region54: #{tpu_custom_call.1} parent=1 // pred_region
      %s292 = ssub.s32 32, 32
      %293 = vsyncadd [#allocation9], %s292
      %s295 = sshll.u32 [#allocation10], 4
      %s296 = int_to_ptr.vmem [resolvable:$true] %s295
      %298 = dma.vmem_to_hbm [thread:$0]  %s296, 32, %s8, [#allocation9]
    $region55: #{tpu_custom_call.1} parent=1 // pred_fallthru
      _
    // Predicated region
    $region56: #{tpu_custom_call.1} parent=1 // pred_check
      _
    $region57: #{tpu_custom_call.1} parent=1 // pred_check_branch
      %300 = sbr.rel (0) target = $region59
    $region58: #{tpu_custom_call.1} parent=1 // pred_region
      %301 = dma.done [#allocation9], 32
    $region59: #{tpu_custom_call.1} parent=1 // pred_fallthru
      _
    %302 = vsyncpa [#allocation8], 1
    %303 = vsyncpa [#allocation9], 1

</llo_original>
